<compile_context>
chip_gen: v7x
topology: tpu7x:2x2x1
jax: 0.10.0
libtpu: 0.0.40
codegen_flags: <defaults>
</compile_context>

<pallas_src>
import numpy as np
import jax
import jax.numpy as jnp
from jax.experimental import pallas as pl
from jax.experimental.pallas import tpu as pltpu


_TARGET_BLOCK_BYTES = 2 * 1024 * 1024     # ~2 MiB input block per grid step


def _largest_divisor_leq(n, cap):
    cap = max(1, min(int(n), int(cap)))
    for d in range(cap, 0, -1):
        if n % d == 0:
            return d
    return 1


def _pick_row_block(hout, cap):
    """Largest divisor of hout that is a multiple of 8 (or hout itself) and <= cap."""
    valid = [d for d in range(1, hout + 1)
             if hout % d == 0 and (d % 8 == 0 or d == hout)]
    fitting = [d for d in valid if d <= cap]
    return max(fitting) if fitting else min(valid)


def _h_filter_matrix(w):
    """(W, W//2) banded matrix: horizontal [1,2,1] taps at stride 2, left reflection
    column folded in, scaled by the full 1/16 filter normalization."""
    wout = w // 2
    b = np.zeros((w, wout), np.float64)
    for j in range(wout):
        for dw, wgt in ((-1, 1.0), (0, 2.0), (1, 1.0)):
            k = 2 * j + dw
            if k < 0:
                k = -k                       # ReflectionPad2d: column -1 -> column 1
            b[k, j] += wgt
    return (b / 16.0).astype(np.float32)


def _vmem_limit_bytes():
    try:
        cap = int(pltpu.get_tpu_info().vmem_capacity_bytes)
    except Exception:                        # unknown chip / older API -> assume 64 MiB
        cap = 64 * 1024 * 1024
    return max(32 * 1024 * 1024, min((cap * 3) // 4, 100 * 1024 * 1024))


def _blurpool_kernel(x_ref, halo_ref, bh_ref, o_ref):
    # x_ref:    (Cb, TH, 2W)  row-pair tile: [:, i, :W] = x[2i], [:, i, W:] = x[2i+1]
    # halo_ref: (Cb, 1, 2, W) row pair just above the tile (odd half = x[2*i0 - 1];
    #                         for the first tile the clamped index selects x[1], which
    #                         is exactly the reflected row).
    # bh_ref:   (W, Wout)     horizontal [1,2,1]/16 + stride-2 + left-reflect matrix
    # o_ref:    (Cb, TH, Wout)
    f32 = jnp.float32
    cb, th, w2 = x_ref.shape
    w = w2 // 2

    blk = x_ref[...].astype(f32)
    xe = blk[:, :, :w]                                   # x[2i]      (center tap)
    xo = blk[:, :, w:]                                   # x[2i + 1]  (lower tap)
    xa = halo_ref[...][:, :, 1, :].astype(f32)           # (Cb, 1, W): x[2*i0 - 1]

    # Upper vertical tap x[2i - 1]: previous odd row (halo for the first tile row).
    if th > 1:
        xm = jnp.concatenate([xa, xo[:, : th - 1, :]], axis=1)
    else:
        xm = xa
    v = xm + 2.0 * xe + xo                               # vertical [1,2,1], rows decimated

    # Horizontal [1,2,1]/16 + stride-2 decimation + left reflection as one small matmul
    # on the otherwise-idle MXU (contraction along the lane dim, no relayout needed).
    out = jnp.dot(v.reshape(cb * th, w), bh_ref[...].astype(f32),
                  preferred_element_type=f32)
    o_ref[...] = out.reshape(o_ref.shape).astype(o_ref.dtype)


def downsample(x, *, channel_block=None, row_block=None,
               target_block_bytes=_TARGET_BLOCK_BYTES):
    """BlurPool Downsample (reflect pad, filt_size=3, stride=2), NCHW in / NCHW out.

    x: (N, C, H, W) with even H, W  ->  (N, C, H//2, W//2), same dtype.
    """
    n, c, h, w = x.shape
    assert h % 2 == 0 and w % 2 == 0, "even spatial dims expected for stride-2 blurpool"
    hout, wout = h // 2, w // 2
    itemsize = x.dtype.itemsize

    # Tiling: row tiles (sublane dim, multiple of 8) and channel groups sized so the
    # per-step input block is ~target_block_bytes.
    if row_block is None:
        th_cap = max(8, target_block_bytes // max(1, 2 * w * itemsize))
        th = _pick_row_block(hout, th_cap)
    else:
        th = int(row_block)
        assert hout % th == 0
    if channel_block is None:
        cb_cap = max(1, target_block_bytes // max(1, th * 2 * w * itemsize))
        cb = _largest_divisor_leq(c, cb_cap)
    else:
        cb = int(channel_block)
        assert c % cb == 0

    # Free (contiguous) views of x: no HBM transpose/copy passes.
    x_pairs = x.reshape(n, c, hout, 2 * w)      # [even row | odd row] per output row
    x_phase = x.reshape(n, c, hout, 2, w)       # used only for the 1-row halo block

    bh = jnp.asarray(_h_filter_matrix(w))

    grid = (n, c // cb, hout // th)

    in_specs = [
        pl.BlockSpec((None, cb, th, 2 * w), lambda ni, ci, ti: (ni, ci, ti, 0)),
        pl.BlockSpec((None, cb, 1, 2, w),
                     lambda ni, ci, ti: (ni, ci, jnp.maximum(ti * th - 1, 0), 0, 0)),
        pl.BlockSpec((w, wout), lambda ni, ci, ti: (0, 0)),
    ]
    out_specs = pl.BlockSpec((None, cb, th, wout), lambda ni, ci, ti: (ni, ci, ti, 0))

    cost = pl.CostEstimate(
        flops=18 * n * c * hout * wout,
        transcendentals=0,
        bytes_accessed=x.size * itemsize + n * c * hout * wout * itemsize,
    )

    return pl.pallas_call(
        _blurpool_kernel,
        out_shape=jax.ShapeDtypeStruct((n, c, hout, wout), x.dtype),
        grid=grid,
        in_specs=in_specs,
        out_specs=out_specs,
        compiler_params=pltpu.CompilerParams(
            dimension_semantics=("parallel", "parallel", "parallel"),
            vmem_limit_bytes=_vmem_limit_bytes(),
        ),
        cost_estimate=cost,
    )(x_pairs, x_phase, bh)


def _ref_blurpool(x):
    """NumPy reference of F.conv2d(ReflectionPad2d([1,1,1,1])(x), filt, stride=2, groups=C)."""
    x = np.asarray(x, np.float64)
    n, c, h, w = x.shape
    ho, wo = h // 2, w // 2
    xp = np.pad(x, ((0, 0), (0, 0), (1, 1), (1, 1)), mode="reflect")
    a = np.array([1.0, 2.0, 1.0])
    f = np.outer(a, a) / 16.0
    out = np.zeros((n, c, ho, wo), np.float64)
    for kh in range(3):
        for kw in range(3):
            out += f[kh, kw] * xp[:, :, kh::2, kw::2][:, :, :ho, :wo]
    return out.astype(np.float32)


if __name__ == "__main__":
    key = jax.random.PRNGKey(0)
    k1, k2 = jax.random.split(key)

    # Canonical small shape.  Integer-valued inputs keep every intermediate exactly
    # representable, so the comparison is exact regardless of MXU accumulation details.
    n, c, h, w = 2, 4, 16, 16
    x = jax.random.randint(k1, (n, c, h, w), -8, 8).astype(jnp.float32)
    out = jax.block_until_ready(downsample(x))
    assert out.shape == (n, c, h // 2, w // 2), out.shape
    np.testing.assert_allclose(np.asarray(out), _ref_blurpool(x), rtol=1e-5, atol=1e-5)

    # Exercise the channel-group and row-tile grid axes (incl. the cross-tile halo row).
    n2, c2, h2, w2 = 1, 6, 32, 24
    x2 = jax.random.randint(k2, (n2, c2, h2, w2), -8, 8).astype(jnp.float32)
    out2 = jax.block_until_ready(downsample(x2, channel_block=3, row_block=8))
    np.testing.assert_allclose(np.asarray(out2), _ref_blurpool(x2), rtol=1e-5, atol=1e-5)

    print("KERNEL_OK")
</pallas_src>

<mosaic_0001>
module attributes {stable_mosaic.version = 11 : i64} {
  func.func @_blurpool_kernel(%arg0: i32, %arg1: i32, %arg2: i32, %arg3: memref<1x4x8x32xf32, #tpu.memory_space<vmem>>, %arg4: memref<1x4x1x2x16xf32, #tpu.memory_space<vmem>>, %arg5: memref<16x8xf32, #tpu.memory_space<vmem>>, %arg6: memref<1x4x8x8xf32, #tpu.memory_space<vmem>>) attributes {dimension_semantics = [#tpu.dimension_semantics<parallel>, #tpu.dimension_semantics<parallel>, #tpu.dimension_semantics<parallel>], iteration_bounds = array<i64: 2, 1, 1>, scalar_prefetch = 0 : i64, scratch_operands = 0 : i64, tpu.core_type = #tpu.core_type<tc>, window_params = [{transform_indices = @transform_0, window_bounds = array<i64: 1, 4, 8, 32>}, {transform_indices = @transform_1, window_bounds = array<i64: 1, 4, 1, 2, 16>}, {pipeline_mode = #tpu.pipeline_mode<synchronous>, transform_indices = @transform_2, window_bounds = array<i64: 16, 8>}, {transform_indices = @transform_3, window_bounds = array<i64: 1, 4, 8, 8>}]} {
    %c0 = arith.constant 0 : index
    %c0_0 = arith.constant 0 : index
    %c0_1 = arith.constant 0 : index
    %c0_2 = arith.constant 0 : index
    %0 = vector.load %arg3[%c0, %c0_0, %c0_1, %c0_2] : memref<1x4x8x32xf32, #tpu.memory_space<vmem>>, vector<1x4x8x32xf32>
    %1 = vector.shape_cast %0 : vector<1x4x8x32xf32> to vector<4x8x32xf32>
    %2 = vector.extract_strided_slice %1 {offsets = [0, 0, 0], sizes = [4, 8, 16], strides = [1, 1, 1]} : vector<4x8x32xf32> to vector<4x8x16xf32>
    %3 = vector.extract_strided_slice %1 {offsets = [0, 0, 16], sizes = [4, 8, 16], strides = [1, 1, 1]} : vector<4x8x32xf32> to vector<4x8x16xf32>
    %c0_3 = arith.constant 0 : index
    %c0_4 = arith.constant 0 : index
    %c0_5 = arith.constant 0 : index
    %c0_6 = arith.constant 0 : index
    %c0_7 = arith.constant 0 : index
    %4 = vector.load %arg4[%c0_3, %c0_4, %c0_5, %c0_6, %c0_7] : memref<1x4x1x2x16xf32, #tpu.memory_space<vmem>>, vector<1x4x1x2x16xf32>
    %5 = vector.shape_cast %4 : vector<1x4x1x2x16xf32> to vector<4x1x2x16xf32>
    %6 = vector.extract_strided_slice %5 {offsets = [0, 0, 1, 0], sizes = [4, 1, 1, 16], strides = [1, 1, 1, 1]} : vector<4x1x2x16xf32> to vector<4x1x1x16xf32>
    %7 = vector.shape_cast %6 : vector<4x1x1x16xf32> to vector<4x1x16xf32>
    %8 = vector.extract_strided_slice %3 {offsets = [0, 0, 0], sizes = [4, 7, 16], strides = [1, 1, 1]} : vector<4x8x16xf32> to vector<4x7x16xf32>
    %9 = tpu.concatenate %7, %8 in 1 : vector<4x1x16xf32>, vector<4x7x16xf32> -> vector<4x8x16xf32>
    %cst = arith.constant 2.000000e+00 : f32
    %10 = vector.broadcast %cst : f32 to vector<4x8x16xf32>
    %11 = arith.mulf %10, %2 : vector<4x8x16xf32>
    %12 = arith.addf %9, %11 : vector<4x8x16xf32>
    %13 = arith.addf %12, %3 : vector<4x8x16xf32>
    %14 = vector.shape_cast %13 : vector<4x8x16xf32> to vector<32x16xf32>
    %c0_8 = arith.constant 0 : index
    %c0_9 = arith.constant 0 : index
    %15 = vector.load %arg5[%c0_8, %c0_9] : memref<16x8xf32, #tpu.memory_space<vmem>>, vector<16x8xf32>
    %cst_10 = arith.constant dense<0.000000e+00> : vector<32x8xf32>
    %16 = tpu.matmul %14, %15, %cst_10 {dimension_numbers = #tpu.dot_dimension_numbers<[1], [0], [0], [1], [0, 0, 1, 1], [], []>} : vector<32x16xf32>, vector<16x8xf32>, vector<32x8xf32> -> vector<32x8xf32>
    %17 = vector.shape_cast %16 : vector<32x8xf32> to vector<4x8x8xf32>
    %c0_11 = arith.constant 0 : index
    %c0_12 = arith.constant 0 : index
    %c0_13 = arith.constant 0 : index
    %c0_14 = arith.constant 0 : index
    %18 = vector.load %arg6[%c0_11, %c0_12, %c0_13, %c0_14] : memref<1x4x8x8xf32, #tpu.memory_space<vmem>>, vector<1x4x8x8xf32>
    %19 = vector.shape_cast %18 : vector<1x4x8x8xf32> to vector<4x8x8xf32>
    %20 = vector.shape_cast %17 : vector<4x8x8xf32> to vector<1x4x8x8xf32>
    tpu.vector_store %arg6[%c0_11, %c0_12, %c0_13, %c0_14], %20 {strides = array<i32>} : memref<1x4x8x8xf32, #tpu.memory_space<vmem>>, vector<1x4x8x8xf32>,
    return
  }
  func.func @transform_0(%arg0: i32, %arg1: i32, %arg2: i32) -> (i32, i32, i32, i32) {
    %c0_i32 = arith.constant 0 : i32
    %c0_i32_0 = arith.constant 0 : i32
    return %arg0, %arg1, %arg2, %c0_i32 : i32, i32, i32, i32
  }
  func.func @transform_1(%arg0: i32, %arg1: i32, %arg2: i32) -> (i32, i32, i32, i32, i32) {
    %c8_i32 = arith.constant 8 : i32
    %0 = arith.muli %arg2, %c8_i32 : i32
    %c1_i32 = arith.constant 1 : i32
    %1 = arith.subi %0, %c1_i32 : i32
    %c0_i32 = arith.constant 0 : i32
    %2 = arith.maxsi %1, %c0_i32 : i32
    %c0_i32_0 = arith.constant 0 : i32
    %c0_i32_1 = arith.constant 0 : i32
    %c0_i32_2 = arith.constant 0 : i32
    return %arg0, %arg1, %2, %c0_i32_0, %c0_i32_1 : i32, i32, i32, i32, i32
  }
  func.func @transform_2(%arg0: i32, %arg1: i32, %arg2: i32) -> (i32, i32) {
    %c0_i32 = arith.constant 0 : i32
    %c0_i32_0 = arith.constant 0 : i32
    %c0_i32_1 = arith.constant 0 : i32
    return %c0_i32, %c0_i32_0 : i32, i32
  }
  func.func @transform_3(%arg0: i32, %arg1: i32, %arg2: i32) -> (i32, i32, i32, i32) {
    %c0_i32 = arith.constant 0 : i32
    %c0_i32_0 = arith.constant 0 : i32
    return %arg0, %arg1, %arg2, %c0_i32 : i32, i32, i32, i32
  }
}

</mosaic_0001>

<llo_original>
// kernel: tpu_custom_call.1
$region0: #{tpu_custom_call.1}
  #allocation0 [shape = 'u32[]', space=smem, size = 0x4, offset = 0x4, fixed_abs, tag = 'smem constant byte address 0x4 - core index']
  #allocation1 [shape = 'u32[144,128]{1,0:T(1,128)}', space=vmem, size = 0x12000, scoped, tag = 'internal scratch']
  %s0 = inlined_call_operand.hbm [shape: f32[2,4,8,32], index: 0, kind: input, shape index: {}]
  %s1 = inlined_call_operand.hbm [shape: f32[2,4,8,2,16], index: 1, kind: input, shape index: {}]
  %s2 = inlined_call_operand.vmem [shape: f32[16,8], index: 2, kind: input, shape index: {}]
  %s3 = inlined_call_operand.hbm [shape: f32[2,4,8,8], index: 3, kind: output, shape index: {}]
  %s4 = sld [smem:[#allocation0]]
  $region53: #{tpu_custom_call.1} parent=0
    _
  %s6 = ssub.s32 1, %s4
  %s7 = scalar_select 0, %s6, %s4
  $region1: #{tpu_custom_call.1} parent=0
    #allocation2 [shape = 'u8[32768]{0}', space=vmem, size = 0x8000, scoped, tag = 'input window, operand 0']
    #allocation3 [shape = 's32[2]{0}', space=sflag, size = 0x8, scoped, tag = 'scoped memory for tpu_custom_call.1']
    #allocation4 [shape = 's32[2]{0}', space=sflag, size = 0x8, scoped, tag = 'scoped memory for tpu_custom_call.1']
    #allocation5 [shape = 'u8[8192]{0}', space=vmem, size = 0x2000, scoped, tag = 'input window, operand 1']
    #allocation6 [shape = 's32[2]{0}', space=sflag, size = 0x8, scoped, tag = 'scoped memory for tpu_custom_call.1']
    #allocation7 [shape = 'u8[32768]{0}', space=vmem, size = 0x8000, scoped, tag = 'output window, operand 0']
    %8 = vsyncpa [#allocation3], 0
    %s9 = scalar_lea.sflag [#allocation3], 1
    %10 = vsyncpa %s9, 0
    %11 = vsyncpa [#allocation6], 0
    %s12 = scalar_lea.sflag [#allocation6], 1
    %13 = vsyncpa %s12, 0
    %14 = vsyncpa [#allocation4], 0
    %s15 = scalar_lea.sflag [#allocation4], 1
    %16 = vsyncpa %s15, 0
    loop: start=0, step=1, limit=4
    $region2: #{tpu_custom_call.1} parent=1 // loop_pre_header
      _
    $region3: #{tpu_custom_call.1} parent=1 // loop_header
      %s18 = sphi 0, %s22
      %p19 = scmp.ge.s32.totalorder %s18, 4
      %s25 = sphi 0, %s44
      %s26 = sphi 0, %s40
      %s27 = sphi 0, %s36
      %s28 = sphi 0, %s25
      %s29 = sphi 0, %s26
      %s30 = sphi 0, %s27
      %s31 = sphi 0, %s28
      %s32 = sphi 0, %s29
      %s33 = sphi 0, %s30
      %s51 = sphi 0, %s53
      %s54 = sphi 0, %s51
      %s55 = sphi 0, %s54
      %s71 = sphi 0, %s55
      %s89 = sphi 0, %s91
      %s92 = sphi 0, %s89
      %s93 = sphi 0, %s92
      %s109 = sphi 0, %s93
      %s113 = sphi 0, %s113
      %s115 = sphi 0, %s113
      %s116 = sphi 0, %s115
      %s130 = sphi 0, %s116
      %s140 = sphi 0, %s142
      %s143 = sphi 0, %s140
      %s144 = sphi 0, %s143
      %s160 = sphi 0, %s144
    $region4: #{tpu_custom_call.1} parent=1 // loop_header_branch
      %21 = sbr.rel (%p19) target = $region8
    $region5: #{tpu_custom_call.1} parent=1 // loop_body
      %s23 = ssub.s32 %s18, 1
      %s24 = ssub.s32 %s18, 2
      %s34 = sadd.s32 1, %s27
      %p35 = scmp.ge.s32.totalorder %s34, 1
      %s36 = scalar_select %p35, 0, %s34
      %s37 = sadd.s32 1, %s26
      %s38 = scalar_select %p35, %s37, %s26
      %p39 = scmp.ge.s32.totalorder %s38, 1
      %s40 = scalar_select %p39, 0, %s38
      %s41 = sadd.s32 1, %s25
      %s42 = scalar_select %p39, %s41, %s25
      %p43 = scmp.ge.s32.totalorder %s42, 2
      %s44 = scalar_select %p43, 0, %s42
      %s45 = ssub.s32 %s25, %s44
      %s46 = ssub.s32 %s26, %s40
      %s47 = sor.u32 %s45, %s46
      %s48 = ssub.s32 %s27, %s36
      %s49 = sor.u32 %s47, %s48
      %p50 = scmp.eq.s32.totalorder %s49, 0
      %s52 = sadd.s32 %s51, 1
      %s53 = scalar_select %p50, %s51, %s52
      %p56 = pneg %p50
      %p57 = scmp.eq.s32.totalorder %s18, 1
      %p58 = por %p56, %p57
      %p59 = scmp.ne.s32.totalorder %s51, %s54
      %p60 = scmp.eq.s32.totalorder %s18, 0
      %p61 = por %p59, %p60
      %p62 = scmp.ne.s32.totalorder %s51, %s54
      %p63 = scmp.eq.s32.totalorder %s23, 1
      %p64 = por %p62, %p63
      %p65 = scmp.ne.s32.totalorder %s54, %s55
      %p66 = scmp.eq.s32.totalorder %s23, 0
      %p67 = por %p65, %p66
      %p68 = scmp.ne.s32.totalorder %s54, %s55
      %p69 = scmp.eq.s32.totalorder %s24, 1
      %p70 = por %p68, %p69
      %p72 = scmp.ne.s32.totalorder %s55, %s71
      %p73 = scmp.eq.s32.totalorder %s24, 0
      %p74 = por %p72, %p73
      %s75 = smul.u32 %s27, 8
      %s76 = ssub.s32 %s75, 1
      %p77 = scmp.gt.s32.totalorder %s76, 0
      %s78 = scalar_select %p77, %s76, 0
      %s79 = smul.u32 %s36, 8
      %s80 = ssub.s32 %s79, 1
      %p81 = scmp.gt.s32.totalorder %s80, 0
      %s82 = scalar_select %p81, %s80, 0
      %s83 = ssub.s32 %s25, %s44
      %s84 = ssub.s32 %s26, %s40
      %s85 = sor.u32 %s83, %s84
      %s86 = ssub.s32 %s78, %s82
      %s87 = sor.u32 %s85, %s86
      %p88 = scmp.eq.s32.totalorder %s87, 0
      %s90 = sadd.s32 %s89, 1
      %s91 = scalar_select %p88, %s89, %s90
      %p94 = pneg %p88
      %p95 = scmp.eq.s32.totalorder %s18, 1
      %p96 = por %p94, %p95
      %p97 = scmp.ne.s32.totalorder %s89, %s92
      %p98 = scmp.eq.s32.totalorder %s18, 0
      %p99 = por %p97, %p98
      %p100 = scmp.ne.s32.totalorder %s89, %s92
      %p101 = scmp.eq.s32.totalorder %s23, 1
      %p102 = por %p100, %p101
      %p103 = scmp.ne.s32.totalorder %s92, %s93
      %p104 = scmp.eq.s32.totalorder %s23, 0
      %p105 = por %p103, %p104
      %p106 = scmp.ne.s32.totalorder %s92, %s93
      %p107 = scmp.eq.s32.totalorder %s24, 1
      %p108 = por %p106, %p107
      %p110 = scmp.ne.s32.totalorder %s93, %s109
      %p111 = scmp.eq.s32.totalorder %s24, 0
      %p112 = por %p110, %p111
      %s114 = sadd.s32 %s113, 1
      %p117 = scmp.eq.s32.totalorder %s18, 1
      %p118 = scmp.ne.s32.totalorder %s113, %s115
      %p119 = scmp.eq.s32.totalorder %s18, 0
      %p120 = por %p118, %p119
      %p121 = scmp.ne.s32.totalorder %s113, %s115
      %p122 = scmp.eq.s32.totalorder %s23, 1
      %p123 = por %p121, %p122
      %p124 = scmp.ne.s32.totalorder %s115, %s116
      %p125 = scmp.eq.s32.totalorder %s23, 0
      %p126 = por %p124, %p125
      %p127 = scmp.ne.s32.totalorder %s115, %s116
      %p128 = scmp.eq.s32.totalorder %s24, 1
      %p129 = por %p127, %p128
      %p131 = scmp.ne.s32.totalorder %s116, %s130
      %p132 = scmp.eq.s32.totalorder %s24, 0
      %p133 = por %p131, %p132
      %s134 = ssub.s32 %s25, %s44
      %s135 = ssub.s32 %s26, %s40
      %s136 = sor.u32 %s134, %s135
      %s137 = ssub.s32 %s27, %s36
      %s138 = sor.u32 %s136, %s137
      %p139 = scmp.eq.s32.totalorder %s138, 0
      %s141 = sadd.s32 %s140, 1
      %s142 = scalar_select %p139, %s140, %s141
      %p145 = pneg %p139
      %p146 = scmp.eq.s32.totalorder %s18, 1
      %p147 = por %p145, %p146
      %p148 = scmp.ne.s32.totalorder %s140, %s143
      %p149 = scmp.eq.s32.totalorder %s18, 0
      %p150 = por %p148, %p149
      %p151 = scmp.ne.s32.totalorder %s140, %s143
      %p152 = scmp.eq.s32.totalorder %s23, 1
      %p153 = por %p151, %p152
      %p154 = scmp.ne.s32.totalorder %s143, %s144
      %p155 = scmp.eq.s32.totalorder %s23, 0
      %p156 = por %p154, %p155
      %p157 = scmp.ne.s32.totalorder %s143, %s144
      %p158 = scmp.eq.s32.totalorder %s24, 1
      %p159 = por %p157, %p158
      %p161 = scmp.ne.s32.totalorder %s144, %s160
      %p162 = scmp.eq.s32.totalorder %s24, 0
      %p163 = por %p161, %p162
      %p164 = scmp.le.s32.totalorder 1, %s18
      %p165 = scmp.lt.s32.totalorder %s18, 3
      %p166 = pnand %p164, %p165
      %p167 = pneg %p166
      // Predicated region
      $region9: #{tpu_custom_call.1} parent=5 // pred_check
        _
      $region10: #{tpu_custom_call.1} parent=5 // pred_check_branch
        %169 = sbr.rel (%p166) target = $region12
      $region11: #{tpu_custom_call.1} parent=5 // pred_region
        %s170 = ssub.s32 %s18, 1
        // Predicated region
        $region13: #{tpu_custom_call.1} parent=11 // pred_check
          %p171 = pneg %p126
        $region14: #{tpu_custom_call.1} parent=11 // pred_check_branch
          %173 = sbr.rel (%p171) target = $region16
        $region15: #{tpu_custom_call.1} parent=11 // pred_region
          _
        $region16: #{tpu_custom_call.1} parent=11 // pred_fallthru
          _
      $region12: #{tpu_custom_call.1} parent=5 // pred_fallthru
        _
      %p174 = scmp.lt.s32.totalorder %s18, 2
      // Predicated region
      $region17: #{tpu_custom_call.1} parent=5 // pred_check
        %p175 = pneg %p174
      $region18: #{tpu_custom_call.1} parent=5 // pred_check_branch
        %177 = sbr.rel (%p175) target = $region20
      $region19: #{tpu_custom_call.1} parent=5 // pred_region
        // Predicated region
        $region21: #{tpu_custom_call.1} parent=19 // pred_check
          %p178 = pneg %p61
        $region22: #{tpu_custom_call.1} parent=19 // pred_check_branch
          %180 = sbr.rel (%p178) target = $region24
        $region23: #{tpu_custom_call.1} parent=19 // pred_region
          %s181 = sand.u32 %s51, 1
          %s182 = scalar_lea.sflag [#allocation3], %s181
          %s183 = sand.u32 %s51, 1
          %s184 = smul.addr %s183, 32
          %s185 = scalar_lea.vmem [#allocation2], %s184
          %s186 = smul.u32 4, %s26
          %s188 = ssub.s32 512, 512
          %189 = vsyncadd %s182, %s188
          %s190 = sadd.s32 %s27, %s186
          %s191 = smul.addr %s25, 4
          %s192 = sadd.s32 %s190, %s191
          %s193 = smul.addr %s192, 128
          %s194 = scalar_lea.hbm %s0, %s193
          %s195 = sshll.u32 %s185, 4
          %s196 = int_to_ptr.vmem [resolvable:$true] %s195
          %201 = dma.hbm_to_vmem [thread:$0]  %s194, 512, %s196, %s182, 128, 128, 8
        $region24: #{tpu_custom_call.1} parent=19 // pred_fallthru
          _
        // Predicated region
        $region25: #{tpu_custom_call.1} parent=19 // pred_check
          %p202 = pneg %p99
        $region26: #{tpu_custom_call.1} parent=19 // pred_check_branch
          %204 = sbr.rel (%p202) target = $region28
        $region27: #{tpu_custom_call.1} parent=19 // pred_region
          %s205 = sand.u32 %s89, 1
          %s206 = scalar_lea.sflag [#allocation6], %s205
          %s207 = sand.u32 %s89, 1
          %s208 = smul.addr %s207, 8
          %s209 = scalar_lea.vmem [#allocation5], %s208
          %s210 = smul.u32 %s27, 8
          %s211 = ssub.s32 %s210, 1
          %p212 = scmp.gt.s32.totalorder %s211, 0
          %s213 = scalar_select %p212, %s211, 0
          %s214 = smul.u32 4, %s26
          %s216 = ssub.s32 128, 128
          %217 = vsyncadd %s206, %s216
          %s218 = smul.addr %s214, 8
          %s219 = sadd.s32 %s213, %s218
          %s220 = smul.addr %s25, 32
          %s221 = sadd.s32 %s219, %s220
          %s222 = smul.addr %s221, 32
          %s223 = scalar_lea.hbm %s1, %s222
          %s224 = sshll.u32 %s209, 4
          %s225 = int_to_ptr.vmem [resolvable:$true] %s224
          %230 = dma.hbm_to_vmem [thread:$0]  %s223, 128, %s225, %s206, 256, 32, 2
        $region28: #{tpu_custom_call.1} parent=19 // pred_fallthru
          _
      $region20: #{tpu_custom_call.1} parent=5 // pred_fallthru
        _
      %p231 = scmp.le.s32.totalorder 1, %s18
      %p232 = scmp.lt.s32.totalorder %s18, 3
      %p233 = pnand %p231, %p232
      %p234 = pneg %p233
      // Predicated region
      $region29: #{tpu_custom_call.1} parent=5 // pred_check
        _
      $region30: #{tpu_custom_call.1} parent=5 // pred_check_branch
        %236 = sbr.rel (%p233) target = $region32
      $region31: #{tpu_custom_call.1} parent=5 // pred_region
        %s237 = ssub.s32 %s18, 1
        %s238 = sand.u32 %s54, 1
        %s239 = scalar_lea.sflag [#allocation3], %s238
        %s240 = sand.u32 %s54, 1
        %s241 = smul.addr %s240, 32
        %s242 = scalar_lea.vmem [#allocation2], %s241
        // Predicated region
        $region33: #{tpu_custom_call.1} parent=31 // pred_check
          %p243 = pneg %p67
        $region34: #{tpu_custom_call.1} parent=31 // pred_check_branch
          %245 = sbr.rel (%p243) target = $region36
        $region35: #{tpu_custom_call.1} parent=31 // pred_region
          %246 = dma.done %s239, 512
        $region36: #{tpu_custom_call.1} parent=31 // pred_fallthru
          _
        %s247 = sand.u32 %s92, 1
        %s248 = scalar_lea.sflag [#allocation6], %s247
        %s249 = sand.u32 %s92, 1
        %s250 = smul.addr %s249, 8
        %s251 = scalar_lea.vmem [#allocation5], %s250
        // Predicated region
        $region37: #{tpu_custom_call.1} parent=31 // pred_check
          %p252 = pneg %p105
        $region38: #{tpu_custom_call.1} parent=31 // pred_check_branch
          %254 = sbr.rel (%p252) target = $region40
        $region39: #{tpu_custom_call.1} parent=31 // pred_region
          %255 = dma.done %s248, 128
        $region40: #{tpu_custom_call.1} parent=31 // pred_fallthru
          _
        %s256 = sand.u32 %s54, 1
        %s257 = scalar_lea.sflag [#allocation3], %s256
        %s258 = sand.u32 %s54, 1
        %s259 = smul.addr %s258, 32
        %s260 = scalar_lea.vmem [#allocation2], %s259
        %p261 = pneg %p67
        %p262 = pneg %p64
        %s263 = sand.u32 %s92, 1
        %s264 = scalar_lea.sflag [#allocation6], %s263
        %s265 = sand.u32 %s92, 1
        %s266 = smul.addr %s265, 8
        %s267 = scalar_lea.vmem [#allocation5], %s266
        %p268 = pneg %p105
        %p269 = pneg %p102
        %p270 = pneg %p126
        %p271 = pneg %p123
        %p272 = pneg %p156
        %p273 = pneg %p153
        %s274 = sand.u32 %s143, 1
        %s275 = scalar_lea.sflag [#allocation4], %s274
        %s276 = sand.u32 %s143, 1
        %s277 = smul.addr %s276, 32
        %s278 = scalar_lea.vmem [#allocation7], %s277
        %s279 = smul.u32 4, %s29
        %s280 = smul.u32 %s30, 8
        %s281 = ssub.s32 %s280, 1
        %p282 = scmp.gt.s32.totalorder %s281, 0
        %s283 = scalar_select %p282, %s281, 0
        %s284 = smul.u32 4, %s29
        %s285 = smul.u32 4, %s29
        %v286 = vld [vmem:[%s242] sm:$0xff]
        %v287 = vld [vmem:[%s242 + $0x8] sm:$0xff]
        %v288 = vld [vmem:[%s242 + $0x10] sm:$0xff]
        %v289 = vld [vmem:[%s242 + $0x18] sm:$0xff]
        %v290 = vld [vmem:[%s251] sm:$0x3]
        %v291 = vld [vmem:[%s251 + $0x2] sm:$0x3]
        %v292 = vld [vmem:[%s251 + $0x4] sm:$0x3]
        %v293 = vld [vmem:[%s251 + $0x6] sm:$0x3]
        %v298 = vrot.slane %v290, 1
        %v299 = vrot.slane %v291, 1
        %v300 = vrot.slane %v292, 1
        %v301 = vrot.slane %v293, 1
        %v310 = vrot.slane %v286, 7
        %v311 = vrot.slane %v287, 7
        %v312 = vrot.slane %v288, 7
        %v313 = vrot.slane %v289, 7
        %314 = vrot.lane.b32.xlu0 %v310, 112
        %v315 = vpop.permute.xlu0 %314
        %316 = vrot.lane.b32.xlu0 %v311, 112
        %v317 = vpop.permute.xlu0 %316
        %318 = vrot.lane.b32.xlu0 %v312, 112
        %v319 = vpop.permute.xlu0 %318
        %320 = vrot.lane.b32.xlu0 %v313, 112
        %v321 = vpop.permute.xlu0 %320
        %vm326 = vcmask 1040384
        %v327 = vsel %vm326, %v298, %v315
        %v328 = vsel %vm326, %v299, %v317
        %v329 = vsel %vm326, %v300, %v319
        %v330 = vsel %vm326, %v301, %v321
        %v331 = vmul.f32 %v286, 2.0
        %v332 = vmul.f32 %v287, 2.0
        %v333 = vmul.f32 %v288, 2.0
        %v334 = vmul.f32 %v289, 2.0
        %v335 = vadd.f32 %v327, %v331
        %v336 = vadd.f32 %v328, %v332
        %v337 = vadd.f32 %v329, %v333
        %v338 = vadd.f32 %v330, %v334
        %339 = vrot.lane.b32.xlu0 %v286, 112
        %v340 = vpop.permute.xlu0 %339
        %341 = vrot.lane.b32.xlu0 %v287, 112
        %v342 = vpop.permute.xlu0 %341
        %343 = vrot.lane.b32.xlu0 %v288, 112
        %v344 = vpop.permute.xlu0 %343
        %345 = vrot.lane.b32.xlu0 %v289, 112
        %v346 = vpop.permute.xlu0 %345
        %v351 = vadd.f32 %v335, %v340
        %v352 = vadd.f32 %v336, %v342
        %v353 = vadd.f32 %v337, %v344
        %v354 = vadd.f32 %v338, %v346
        %v355 = vld [vmem:[%s2] sm:$0xff]
        %v356 = vld [vmem:[%s2 + $0x8] sm:$0xff]
        %vm357 = vcmask 130048
        %v359 = vsel %vm357, %v351, 0
        %v362 = vsel %vm357, %v352, 0
        %v365 = vsel %vm357, %v353, 0
        %v368 = vsel %vm357, %v354, 0
        %370 = vmatprep.subr.mxu0 0.0
        %371 = vmatpush1.msra.mxu0 %v355
        %372 = vmatprep.subr.mxu0 0.0
        %373 = vmatpush1.msra.mxu0 %v356
        %374 = vmatprep.subr.mxu0 0.0
        %375 = vmatpush1.msra.mxu0 0.0
        %376 = vmatprep.subr.mxu0 0.0
        %377 = vmatpush1.msra.mxu0 0.0
        %378 = vmatprep.subr.mxu0 0.0
        %379 = vmatpush1.msra.mxu0 0.0
        %380 = vmatprep.subr.mxu0 0.0
        %381 = vmatpush1.msra.mxu0 0.0
        %382 = vmatprep.subr.mxu0 0.0
        %383 = vmatpush1.msra.mxu0 0.0
        %384 = vmatprep.subr.mxu0 0.0
        %385 = vmatpush1.msra.mxu0 0.0
        %386 = vmatprep.subr.mxu0 0.0
        %387 = vmatpush1.msra.mxu0 0.0
        %388 = vmatprep.subr.mxu0 0.0
        %389 = vmatpush1.msra.mxu0 0.0
        %390 = vmatprep.subr.mxu0 0.0
        %391 = vmatpush1.msra.mxu0 0.0
        %392 = vmatprep.subr.mxu0 0.0
        %393 = vmatpush1.msra.mxu0 0.0
        %394 = vmatprep.subr.mxu0 0.0
        %395 = vmatpush1.msra.mxu0 0.0
        %396 = vmatprep.subr.mxu0 0.0
        %397 = vmatpush1.msra.mxu0 0.0
        %398 = vmatprep.subr.mxu0 0.0
        %399 = vmatpush1.msra.mxu0 0.0
        %400 = vmatprep.subr.mxu0 0.0
        %401 = vmatpush1.msra.mxu0 0.0
        %402 = vmatprep.subr.mxu0 0.0
        %403 = vmatpush1.msra.mxu0 0.0
        %404 = vmatprep.subr.mxu0 0.0
        %405 = vmatpush1.msra.mxu0 0.0
        %406 = vmatprep.subr.mxu0 0.0
        %407 = vmatpush1.msra.mxu0 0.0
        %408 = vmatprep.subr.mxu0 0.0
        %409 = vmatpush1.msra.mxu0 0.0
        %410 = vmatprep.subr.mxu0 0.0
        %411 = vmatpush1.msra.mxu0 0.0
        %412 = vmatprep.subr.mxu0 0.0
        %413 = vmatpush1.msra.mxu0 0.0
        %414 = vmatprep.subr.mxu0 0.0
        %415 = vmatpush1.msra.mxu0 0.0
        %416 = vmatprep.subr.mxu0 0.0
        %417 = vmatpush1.msra.mxu0 0.0
        %418 = vmatprep.subr.mxu0 0.0
        %419 = vmatpush1.msra.mxu0 0.0
        %420 = vmatprep.subr.mxu0 0.0
        %421 = vmatpush1.msra.mxu0 0.0
        %422 = vmatprep.subr.mxu0 0.0
        %423 = vmatpush1.msra.mxu0 0.0
        %424 = vmatprep.subr.mxu0 0.0
        %425 = vmatpush1.msra.mxu0 0.0
        %426 = vmatprep.subr.mxu0 0.0
        %427 = vmatpush1.msra.mxu0 0.0
        %428 = vmatprep.subr.mxu0 0.0
        %429 = vmatpush1.msra.mxu0 0.0
        %430 = vmatprep.subr.mxu0 0.0
        %431 = vmatpush1.msra.mxu0 0.0
        %432 = vmatprep.subr.mxu0 0.0
        %433 = vmatpush1.msra.mxu0 0.0
        %434 = vmatprep.mubr.f32.mxu0 0.0
        %435 = vmatmul.mubr.f32.gmra.mrb[0].mxu0 %v359
        %v436 = vpop.f32.mrb[0].mxu0
        %v437 = vadd.f32 0.0, %v436
        %v438 = vpop.f32.mrb[0].mxu0
        %439 = vmatprep.mubr.f32.mxu0 0.0
        %440 = vmatmul.mubr.f32.gmra.mrb[0].mxu0 %v362
        %v441 = vpop.f32.mrb[0].mxu0
        %v442 = vadd.f32 0.0, %v441
        %v443 = vpop.f32.mrb[0].mxu0
        %444 = vmatprep.mubr.f32.mxu0 0.0
        %445 = vmatmul.mubr.f32.gmra.mrb[0].mxu0 %v365
        %v446 = vpop.f32.mrb[0].mxu0
        %v447 = vadd.f32 0.0, %v446
        %v448 = vpop.f32.mrb[0].mxu0
        %449 = vmatprep.mubr.f32.mxu0 0.0
        %450 = vmatmul.mubr.f32.gmra.mrb[0].mxu0 %v368
        %v451 = vpop.f32.mrb[0].mxu0
        %v452 = vadd.f32 0.0, %v451
        %v453 = vpop.f32.mrb[0].mxu0
        %454 = vdwg.mxu0
        %vm455 = vcmask 64512
        %456 = vst.msk [vmem:[%s278] sm:$0xff] %vm455, %v437
        %457 = vst.msk [vmem:[%s278 + $0x8] sm:$0xff] %vm455, %v442
        %458 = vst.msk [vmem:[%s278 + $0x10] sm:$0xff] %vm455, %v447
        %459 = vst.msk [vmem:[%s278 + $0x18] sm:$0xff] %vm455, %v452
        %s460 = sand.u32 %s143, 1
        %s461 = scalar_lea.sflag [#allocation4], %s460
        %s462 = sand.u32 %s143, 1
        %s463 = smul.addr %s462, 32
        %s464 = scalar_lea.vmem [#allocation7], %s463
        // Predicated region
        $region41: #{tpu_custom_call.1} parent=31 // pred_check
          %p465 = pneg %p153
        $region42: #{tpu_custom_call.1} parent=31 // pred_check_branch
          %467 = sbr.rel (%p465) target = $region44
        $region43: #{tpu_custom_call.1} parent=31 // pred_region
          %s468 = smul.u32 4, %s29
          %s470 = ssub.s32 512, 512
          %471 = vsyncadd %s461, %s470
          %s472 = sadd.s32 %s30, %s468
          %s473 = smul.addr %s28, 4
          %s474 = sadd.s32 %s472, %s473
          %s475 = smul.addr %s474, 128
          %s476 = scalar_lea.hbm %s3, %s475
          %s477 = sshll.u32 %s464, 4
          %s478 = int_to_ptr.vmem [resolvable:$true] %s477
          %483 = dma.vmem_to_hbm [thread:$0]  %s478, 512, %s476, %s461, 128, 128, 8
        $region44: #{tpu_custom_call.1} parent=31 // pred_fallthru
          _
      $region32: #{tpu_custom_call.1} parent=5 // pred_fallthru
        _
      %p484 = scmp.le.s32.totalorder 2, %s18
      // Predicated region
      $region45: #{tpu_custom_call.1} parent=5 // pred_check
        %p485 = pneg %p484
      $region46: #{tpu_custom_call.1} parent=5 // pred_check_branch
        %487 = sbr.rel (%p485) target = $region48
      $region47: #{tpu_custom_call.1} parent=5 // pred_region
        %s488 = ssub.s32 %s18, 2
        // Predicated region
        $region49: #{tpu_custom_call.1} parent=47 // pred_check
          %p489 = pneg %p159
        $region50: #{tpu_custom_call.1} parent=47 // pred_check_branch
          %491 = sbr.rel (%p489) target = $region52
        $region51: #{tpu_custom_call.1} parent=47 // pred_region
          %s492 = sand.u32 %s144, 1
          %s493 = scalar_lea.sflag [#allocation4], %s492
          %s494 = sand.u32 %s144, 1
          %s495 = smul.addr %s494, 32
          %s496 = scalar_lea.vmem [#allocation7], %s495
          %497 = dma.done %s493, 512
        $region52: #{tpu_custom_call.1} parent=47 // pred_fallthru
          _
      $region48: #{tpu_custom_call.1} parent=5 // pred_fallthru
        _
    $region6: #{tpu_custom_call.1} parent=1 // loop_footer
      %s22 = sadd.s32 1, %s18
    $region7: #{tpu_custom_call.1} parent=1 // loop_footer_branch
      %17 = sbr.rel target = $region3
    $region8: #{tpu_custom_call.1} parent=1 // loop_exit
      _
    %498 = vsyncpa [#allocation3], 1
    %s499 = scalar_lea.sflag [#allocation3], 1
    %500 = vsyncpa %s499, 1
    %501 = vsyncpa [#allocation6], 1
    %s502 = scalar_lea.sflag [#allocation6], 1
    %503 = vsyncpa %s502, 1
    %504 = vsyncpa [#allocation4], 1
    %s505 = scalar_lea.sflag [#allocation4], 1
    %506 = vsyncpa %s505, 1

</llo_original>
